<compile_context>
chip_gen: v7x
topology: tpu7x:2x2x1
jax: 0.10.0
libtpu: 0.0.40
codegen_flags: <defaults>
</compile_context>

<pallas_src>
import functools

import jax
import jax.numpy as jnp
from jax.experimental import pallas as pl
from jax.experimental.pallas import tpu as pltpu


def _pad8(n):
    return ((n + 7) // 8) * 8


def _round128(n):
    return ((n + 127) // 128) * 128


def _net_kernel(n_enc, n_pre, n_prd, split, ncls, *refs):
    """Fused forward pass, batch-on-lanes layout.

    refs = [xT,                                   # [D_in, TB]
            encW0, encB0, ..., encW_{e-1}, encB_{e-1},
            headW0, headB0,                       # fused first layer of both heads
            preW1, preB1, ...,                    # remaining pretraining-head layers
            prdW1, prdB1, ...,                    # remaining prediction-head layers
            featT, zT, predRawT, predT]           # outputs, all [D_out_pad, TB]
    Weights are torch-layout [out_pad, in_pad]; biases are [out_pad, 1].  `split` is the
    (8-aligned) row where the fused head-0 output switches from pretraining to prediction.
    """
    idx = 0
    x_ref = refs[idx]; idx += 1
    enc = refs[idx: idx + 2 * n_enc]; idx += 2 * n_enc
    head0_w, head0_b = refs[idx], refs[idx + 1]; idx += 2
    pre_rest = refs[idx: idx + 2 * (n_pre - 1)]; idx += 2 * (n_pre - 1)
    prd_rest = refs[idx: idx + 2 * (n_prd - 1)]; idx += 2 * (n_prd - 1)
    feat_ref, z_ref, praw_ref, pred_ref = refs[idx: idx + 4]

    def linear_relu(h, w_ref, b_ref):
        # y = W @ h + b   (equivalent to torch's x @ W.T + b in the transposed layout)
        y = jnp.dot(w_ref[...], h, preferred_element_type=jnp.float32) + b_ref[...]
        return jnp.maximum(y, 0.0)

    # X = X.to(torch.float32)
    h = x_ref[...].astype(jnp.float32)            # [D_in, TB]

    # encoder
    for i in range(n_enc):
        h = linear_relu(h, enc[2 * i], enc[2 * i + 1])
    feat_ref[...] = h                             # features, [rep_pad, TB]

    # fused first layer of both heads (both consume `features`)
    hh = linear_relu(h, head0_w, head0_b)         # [pre0_pad + prd0_pad, TB]
    z = hh[:split, :]
    p = hh[split:, :]

    # remaining pretraining-head layers
    for i in range(n_pre - 1):
        z = linear_relu(z, pre_rest[2 * i], pre_rest[2 * i + 1])
    z_ref[...] = z

    # remaining prediction-head layers
    for i in range(n_prd - 1):
        p = linear_relu(p, prd_rest[2 * i], prd_rest[2 * i + 1])
    praw_ref[...] = p

    # softmax over classes (torch dim=1 == axis 0 in this transposed layout)
    if p.shape[0] != ncls:
        # Padded class rows are exactly 0 after ReLU; exclude them from the softmax.
        row = jax.lax.broadcasted_iota(jnp.int32, p.shape, 0)
        p = jnp.where(row < ncls, p, -1e30)
    m = jnp.max(p, axis=0, keepdims=True)
    e = jnp.exp(p - m)
    denom = jnp.sum(e, axis=0, keepdims=True)
    pred_ref[...] = e / denom                     # exact division; EUP saving is noise here


def _init_linear(key, in_dim, out_dim):
    """Deterministic init mimicking torch.nn.Linear default (uniform +-1/sqrt(in))."""
    kw, kb = jax.random.split(key)
    bound = 1.0 / (in_dim ** 0.5)
    w = jax.random.uniform(kw, (out_dim, in_dim), jnp.float32, -bound, bound)
    b = jax.random.uniform(kb, (out_dim,), jnp.float32, -bound, bound)
    return w, b


def make_mlp_params(key, input_dim, layers_dim, output_dim):
    dims = [input_dim] + list(layers_dim) + [output_dim]
    params = []
    keys = jax.random.split(key, len(dims) - 1)
    for i in range(len(dims) - 1):
        params.append(_init_linear(keys[i], dims[i], dims[i + 1]))
    return params  # list of (W [out,in], b [out])


@jax.jit
def net_forward(x, enc_params, pre_params, prd_params):
    """Calls the fused Pallas kernel. Returns (features, z, pred_raw, pred) in [B, D]."""
    B, D_in = x.shape
    rep = enc_params[-1][0].shape[0]
    ncls = prd_params[-1][0].shape[0]
    n_enc, n_pre, n_prd = len(enc_params), len(pre_params), len(prd_params)

    # ---- batch tile (lanes) ----------------------------------------------------------
    TB_CAP = 2048
    if B <= 128:
        TB = 128                                   # single minimal tile
    elif B <= 2 * TB_CAP:
        TB = _round128((B + 1) // 2)               # exactly 2 tiles -> both TCs on v7x
    else:
        TB = TB_CAP                                # large batch: big tiles, many steps
    Bp = ((B + TB - 1) // TB) * TB
    nb = Bp // TB

    # ---- parameter padding: out dims -> multiples of 8 (sublane aligned) --------------
    # Zero rows/cols + zero bias entries keep padded activation rows exactly 0 through
    # Linear + ReLU, so padding never leaks into real outputs.
    def pad_wb(w, b, in_pad):
        out, inn = w.shape
        out_pad = _pad8(out)
        wp = jnp.pad(w, ((0, out_pad - out), (0, in_pad - inn)))
        bp = jnp.pad(b, (0, out_pad - out)).reshape(-1, 1)
        return wp, bp, out_pad

    flat_params = []
    in_pad = D_in
    for w, b in enc_params:
        wp, bp, in_pad = pad_wb(w, b, in_pad)
        flat_params.extend([wp, bp])
    rep_pad = in_pad

    # fused first layer of the two heads (both read `features`); each section 8-aligned
    pre_w0, pre_b0, pre0_pad = pad_wb(pre_params[0][0], pre_params[0][1], rep_pad)
    prd_w0, prd_b0, prd0_pad = pad_wb(prd_params[0][0], prd_params[0][1], rep_pad)
    flat_params.extend([jnp.concatenate([pre_w0, prd_w0], axis=0),
                        jnp.concatenate([pre_b0, prd_b0], axis=0)])

    in_pad = pre0_pad
    for w, b in pre_params[1:]:
        wp, bp, in_pad = pad_wb(w, b, in_pad)
        flat_params.extend([wp, bp])
    z_pad = in_pad                                  # == rep_pad

    in_pad = prd0_pad
    for w, b in prd_params[1:]:
        wp, bp, in_pad = pad_wb(w, b, in_pad)
        flat_params.extend([wp, bp])
    ncls_pad = in_pad

    # ---- input: transpose to [D_in, B] (features on sublanes, batch on lanes) ---------
    # Under jit this transpose+pad fuses into a single copy feeding the kernel.
    xT = jnp.pad(x.astype(jnp.float32).T, ((0, 0), (0, Bp - B)))

    # ---- VMEM budget from actual tile sizes (x2 for double buffering) -----------------
    f32b = 4
    io_bytes = (D_in + 2 * rep_pad + 2 * ncls_pad) * TB * f32b
    w_bytes = sum(int(p.size) for p in flat_params) * f32b
    act_bytes = (D_in + sum(int(w.shape[0]) for w in flat_params[0::2])) * TB * f32b
    est = 2 * (io_bytes + w_bytes) + 2 * act_bytes
    vmem_limit = min(32 * 1024 * 1024, max(16 * 1024 * 1024, 2 * est))

    kernel = functools.partial(_net_kernel, n_enc, n_pre, n_prd, pre0_pad, ncls)

    batch_spec = lambda d: pl.BlockSpec((d, TB), lambda i: (0, i))
    const_spec = lambda arr: pl.BlockSpec(arr.shape, lambda i: (0, 0))

    in_specs = [batch_spec(D_in)] + [const_spec(p) for p in flat_params]
    out_specs = (batch_spec(rep_pad), batch_spec(z_pad),
                 batch_spec(ncls_pad), batch_spec(ncls_pad))
    out_shape = (
        jax.ShapeDtypeStruct((rep_pad, Bp), jnp.float32),   # features (transposed)
        jax.ShapeDtypeStruct((z_pad, Bp), jnp.float32),     # z (transposed)
        jax.ShapeDtypeStruct((ncls_pad, Bp), jnp.float32),  # pred_raw (transposed)
        jax.ShapeDtypeStruct((ncls_pad, Bp), jnp.float32),  # pred (transposed)
    )

    featT, zT, prawT, predT = pl.pallas_call(
        kernel,
        out_shape=out_shape,
        grid=(nb,),
        in_specs=in_specs,
        out_specs=out_specs,
        compiler_params=pltpu.CompilerParams(
            dimension_semantics=("parallel",),
            vmem_limit_bytes=vmem_limit,
        ),
    )(xT, *flat_params)

    # Back to the torch [B, D] layout, drop batch + feature padding (fused under jit).
    features = featT[:rep, :B].T
    z = zT[:rep, :B].T
    pred_raw = prawT[:ncls, :B].T
    pred = predT[:ncls, :B].T
    return features, z, pred_raw, pred


def net_forward_ref(x, enc_params, pre_params, prd_params):
    """Pure-JAX reference for correctness checking (uses the unpadded parameters)."""
    def mlp(h, params):
        for w, b in params:
            h = jnp.maximum(h @ w.T + b, 0.0)
        return h
    x = x.astype(jnp.float32)
    feat = mlp(x, enc_params)
    z = mlp(feat, pre_params)
    pred_raw = mlp(feat, prd_params)
    pred = jax.nn.softmax(pred_raw, axis=1)
    return feat, z, pred_raw, pred


def _run_case(B, input_dim, encoder_dims, rep_size, pre_dims, prd_dims, n_classes, seed):
    root = jax.random.PRNGKey(seed)
    kx, ke, kp, kd = jax.random.split(root, 4)
    x = jax.random.normal(kx, (B, input_dim), jnp.float32)
    enc_params = make_mlp_params(ke, input_dim, encoder_dims, rep_size)
    pre_params = make_mlp_params(kp, rep_size, pre_dims, rep_size)
    prd_params = make_mlp_params(kd, rep_size, prd_dims, n_classes)

    outs = jax.block_until_ready(net_forward(x, enc_params, pre_params, prd_params))
    refs = net_forward_ref(x, enc_params, pre_params, prd_params)
    for o, r in zip(outs, refs):
        assert o.shape == r.shape and o.dtype == r.dtype
        assert jnp.allclose(o, r, atol=1e-5, rtol=1e-5)


if __name__ == "__main__":
    # Primary small configuration consistent with the module:
    #   input_dim=16, encoder_dims=[32, 32], rep_size=32,
    #   pretraining_head_dims=[32], prediction_head_dims=[32], n_classes=8
    _run_case(B=8, input_dim=16, encoder_dims=[32, 32], rep_size=32,
              pre_dims=[32], prd_dims=[32], n_classes=8, seed=0)

    # Second configuration exercising multi-tile grid, batch padding, a single-layer
    # prediction head, and a non-multiple-of-8 class count (softmax masking path).
    _run_case(B=300, input_dim=16, encoder_dims=[64], rep_size=32,
              pre_dims=[32], prd_dims=[], n_classes=10, seed=0)

    print("KERNEL_OK")
</pallas_src>

<mosaic_0001>
module attributes {stable_mosaic.version = 11 : i64} {
  func.func @_net_kernel(%arg0: i32, %arg1: memref<16x128xf32, #tpu.memory_space<vmem>>, %arg2: memref<32x16xf32, #tpu.memory_space<vmem>>, %arg3: memref<32x1xf32, #tpu.memory_space<vmem>>, %arg4: memref<32x32xf32, #tpu.memory_space<vmem>>, %arg5: memref<32x1xf32, #tpu.memory_space<vmem>>, %arg6: memref<32x32xf32, #tpu.memory_space<vmem>>, %arg7: memref<32x1xf32, #tpu.memory_space<vmem>>, %arg8: memref<64x32xf32, #tpu.memory_space<vmem>>, %arg9: memref<64x1xf32, #tpu.memory_space<vmem>>, %arg10: memref<32x32xf32, #tpu.memory_space<vmem>>, %arg11: memref<32x1xf32, #tpu.memory_space<vmem>>, %arg12: memref<8x32xf32, #tpu.memory_space<vmem>>, %arg13: memref<8x1xf32, #tpu.memory_space<vmem>>, %arg14: memref<32x128xf32, #tpu.memory_space<vmem>>, %arg15: memref<32x128xf32, #tpu.memory_space<vmem>>, %arg16: memref<8x128xf32, #tpu.memory_space<vmem>>, %arg17: memref<8x128xf32, #tpu.memory_space<vmem>>) attributes {dimension_semantics = [#tpu.dimension_semantics<parallel>], iteration_bounds = array<i64: 1>, scalar_prefetch = 0 : i64, scratch_operands = 0 : i64, tpu.core_type = #tpu.core_type<tc>, window_params = [{transform_indices = @transform_0, window_bounds = array<i64: 16, 128>}, {pipeline_mode = #tpu.pipeline_mode<synchronous>, transform_indices = @transform_1, window_bounds = array<i64: 32, 16>}, {pipeline_mode = #tpu.pipeline_mode<synchronous>, transform_indices = @transform_2, window_bounds = array<i64: 32, 1>}, {pipeline_mode = #tpu.pipeline_mode<synchronous>, transform_indices = @transform_3, window_bounds = array<i64: 32, 32>}, {pipeline_mode = #tpu.pipeline_mode<synchronous>, transform_indices = @transform_4, window_bounds = array<i64: 32, 1>}, {pipeline_mode = #tpu.pipeline_mode<synchronous>, transform_indices = @transform_5, window_bounds = array<i64: 32, 32>}, {pipeline_mode = #tpu.pipeline_mode<synchronous>, transform_indices = @transform_6, window_bounds = array<i64: 32, 1>}, {pipeline_mode = #tpu.pipeline_mode<synchronous>, transform_indices = @transform_7, window_bounds = array<i64: 64, 32>}, {pipeline_mode = #tpu.pipeline_mode<synchronous>, transform_indices = @transform_8, window_bounds = array<i64: 64, 1>}, {pipeline_mode = #tpu.pipeline_mode<synchronous>, transform_indices = @transform_9, window_bounds = array<i64: 32, 32>}, {pipeline_mode = #tpu.pipeline_mode<synchronous>, transform_indices = @transform_10, window_bounds = array<i64: 32, 1>}, {pipeline_mode = #tpu.pipeline_mode<synchronous>, transform_indices = @transform_11, window_bounds = array<i64: 8, 32>}, {pipeline_mode = #tpu.pipeline_mode<synchronous>, transform_indices = @transform_12, window_bounds = array<i64: 8, 1>}, {transform_indices = @transform_13, window_bounds = array<i64: 32, 128>}, {transform_indices = @transform_14, window_bounds = array<i64: 32, 128>}, {transform_indices = @transform_15, window_bounds = array<i64: 8, 128>}, {transform_indices = @transform_16, window_bounds = array<i64: 8, 128>}]} {
    %c0 = arith.constant 0 : index
    %c0_0 = arith.constant 0 : index
    %0 = vector.load %arg1[%c0, %c0_0] : memref<16x128xf32, #tpu.memory_space<vmem>>, vector<16x128xf32>
    %c0_1 = arith.constant 0 : index
    %c0_2 = arith.constant 0 : index
    %1 = vector.load %arg2[%c0_1, %c0_2] : memref<32x16xf32, #tpu.memory_space<vmem>>, vector<32x16xf32>
    %cst = arith.constant dense<0.000000e+00> : vector<32x128xf32>
    %2 = tpu.matmul %1, %0, %cst {dimension_numbers = #tpu.dot_dimension_numbers<[1], [0], [0], [1], [0, 0, 1, 1], [], []>} : vector<32x16xf32>, vector<16x128xf32>, vector<32x128xf32> -> vector<32x128xf32>
    %c0_3 = arith.constant 0 : index
    %c0_4 = arith.constant 0 : index
    %3 = vector.load %arg3[%c0_3, %c0_4] : memref<32x1xf32, #tpu.memory_space<vmem>>, vector<32x1xf32>
    %4 = vector.broadcast %3 : vector<32x1xf32> to vector<32x128xf32>
    %5 = arith.addf %2, %4 : vector<32x128xf32>
    %cst_5 = arith.constant 0.000000e+00 : f32
    %6 = vector.broadcast %cst_5 : f32 to vector<32x128xf32>
    %7 = arith.maximumf %5, %6 : vector<32x128xf32>
    %c0_6 = arith.constant 0 : index
    %c0_7 = arith.constant 0 : index
    %8 = vector.load %arg4[%c0_6, %c0_7] : memref<32x32xf32, #tpu.memory_space<vmem>>, vector<32x32xf32>
    %cst_8 = arith.constant dense<0.000000e+00> : vector<32x128xf32>
    %9 = tpu.matmul %8, %7, %cst_8 {dimension_numbers = #tpu.dot_dimension_numbers<[1], [0], [0], [1], [0, 0, 1, 1], [], []>} : vector<32x32xf32>, vector<32x128xf32>, vector<32x128xf32> -> vector<32x128xf32>
    %c0_9 = arith.constant 0 : index
    %c0_10 = arith.constant 0 : index
    %10 = vector.load %arg5[%c0_9, %c0_10] : memref<32x1xf32, #tpu.memory_space<vmem>>, vector<32x1xf32>
    %11 = vector.broadcast %10 : vector<32x1xf32> to vector<32x128xf32>
    %12 = arith.addf %9, %11 : vector<32x128xf32>
    %cst_11 = arith.constant 0.000000e+00 : f32
    %13 = vector.broadcast %cst_11 : f32 to vector<32x128xf32>
    %14 = arith.maximumf %12, %13 : vector<32x128xf32>
    %c0_12 = arith.constant 0 : index
    %c0_13 = arith.constant 0 : index
    %15 = vector.load %arg6[%c0_12, %c0_13] : memref<32x32xf32, #tpu.memory_space<vmem>>, vector<32x32xf32>
    %cst_14 = arith.constant dense<0.000000e+00> : vector<32x128xf32>
    %16 = tpu.matmul %15, %14, %cst_14 {dimension_numbers = #tpu.dot_dimension_numbers<[1], [0], [0], [1], [0, 0, 1, 1], [], []>} : vector<32x32xf32>, vector<32x128xf32>, vector<32x128xf32> -> vector<32x128xf32>
    %c0_15 = arith.constant 0 : index
    %c0_16 = arith.constant 0 : index
    %17 = vector.load %arg7[%c0_15, %c0_16] : memref<32x1xf32, #tpu.memory_space<vmem>>, vector<32x1xf32>
    %18 = vector.broadcast %17 : vector<32x1xf32> to vector<32x128xf32>
    %19 = arith.addf %16, %18 : vector<32x128xf32>
    %cst_17 = arith.constant 0.000000e+00 : f32
    %20 = vector.broadcast %cst_17 : f32 to vector<32x128xf32>
    %21 = arith.maximumf %19, %20 : vector<32x128xf32>
    %c0_18 = arith.constant 0 : index
    %c0_19 = arith.constant 0 : index
    %22 = vector.load %arg14[%c0_18, %c0_19] : memref<32x128xf32, #tpu.memory_space<vmem>>, vector<32x128xf32>
    tpu.vector_store %arg14[%c0_18, %c0_19], %21 {strides = array<i32>} : memref<32x128xf32, #tpu.memory_space<vmem>>, vector<32x128xf32>,
    %c0_20 = arith.constant 0 : index
    %c0_21 = arith.constant 0 : index
    %23 = vector.load %arg8[%c0_20, %c0_21] : memref<64x32xf32, #tpu.memory_space<vmem>>, vector<64x32xf32>
    %cst_22 = arith.constant dense<0.000000e+00> : vector<64x128xf32>
    %24 = tpu.matmul %23, %21, %cst_22 {dimension_numbers = #tpu.dot_dimension_numbers<[1], [0], [0], [1], [0, 0, 1, 1], [], []>} : vector<64x32xf32>, vector<32x128xf32>, vector<64x128xf32> -> vector<64x128xf32>
    %c0_23 = arith.constant 0 : index
    %c0_24 = arith.constant 0 : index
    %25 = vector.load %arg9[%c0_23, %c0_24] : memref<64x1xf32, #tpu.memory_space<vmem>>, vector<64x1xf32>
    %26 = vector.broadcast %25 : vector<64x1xf32> to vector<64x128xf32>
    %27 = arith.addf %24, %26 : vector<64x128xf32>
    %cst_25 = arith.constant 0.000000e+00 : f32
    %28 = vector.broadcast %cst_25 : f32 to vector<64x128xf32>
    %29 = arith.maximumf %27, %28 : vector<64x128xf32>
    %30 = vector.extract_strided_slice %29 {offsets = [0, 0], sizes = [32, 128], strides = [1, 1]} : vector<64x128xf32> to vector<32x128xf32>
    %31 = vector.extract_strided_slice %29 {offsets = [32, 0], sizes = [32, 128], strides = [1, 1]} : vector<64x128xf32> to vector<32x128xf32>
    %c0_26 = arith.constant 0 : index
    %c0_27 = arith.constant 0 : index
    %32 = vector.load %arg10[%c0_26, %c0_27] : memref<32x32xf32, #tpu.memory_space<vmem>>, vector<32x32xf32>
    %cst_28 = arith.constant dense<0.000000e+00> : vector<32x128xf32>
    %33 = tpu.matmul %32, %30, %cst_28 {dimension_numbers = #tpu.dot_dimension_numbers<[1], [0], [0], [1], [0, 0, 1, 1], [], []>} : vector<32x32xf32>, vector<32x128xf32>, vector<32x128xf32> -> vector<32x128xf32>
    %c0_29 = arith.constant 0 : index
    %c0_30 = arith.constant 0 : index
    %34 = vector.load %arg11[%c0_29, %c0_30] : memref<32x1xf32, #tpu.memory_space<vmem>>, vector<32x1xf32>
    %35 = vector.broadcast %34 : vector<32x1xf32> to vector<32x128xf32>
    %36 = arith.addf %33, %35 : vector<32x128xf32>
    %cst_31 = arith.constant 0.000000e+00 : f32
    %37 = vector.broadcast %cst_31 : f32 to vector<32x128xf32>
    %38 = arith.maximumf %36, %37 : vector<32x128xf32>
    %c0_32 = arith.constant 0 : index
    %c0_33 = arith.constant 0 : index
    %39 = vector.load %arg15[%c0_32, %c0_33] : memref<32x128xf32, #tpu.memory_space<vmem>>, vector<32x128xf32>
    tpu.vector_store %arg15[%c0_32, %c0_33], %38 {strides = array<i32>} : memref<32x128xf32, #tpu.memory_space<vmem>>, vector<32x128xf32>,
    %c0_34 = arith.constant 0 : index
    %c0_35 = arith.constant 0 : index
    %40 = vector.load %arg12[%c0_34, %c0_35] : memref<8x32xf32, #tpu.memory_space<vmem>>, vector<8x32xf32>
    %cst_36 = arith.constant dense<0.000000e+00> : vector<8x128xf32>
    %41 = tpu.matmul %40, %31, %cst_36 {dimension_numbers = #tpu.dot_dimension_numbers<[1], [0], [0], [1], [0, 0, 1, 1], [], []>} : vector<8x32xf32>, vector<32x128xf32>, vector<8x128xf32> -> vector<8x128xf32>
    %c0_37 = arith.constant 0 : index
    %c0_38 = arith.constant 0 : index
    %42 = vector.load %arg13[%c0_37, %c0_38] : memref<8x1xf32, #tpu.memory_space<vmem>>, vector<8x1xf32>
    %43 = vector.broadcast %42 : vector<8x1xf32> to vector<8x128xf32>
    %44 = arith.addf %41, %43 : vector<8x128xf32>
    %cst_39 = arith.constant 0.000000e+00 : f32
    %45 = vector.broadcast %cst_39 : f32 to vector<8x128xf32>
    %46 = arith.maximumf %44, %45 : vector<8x128xf32>
    %c0_40 = arith.constant 0 : index
    %c0_41 = arith.constant 0 : index
    %47 = vector.load %arg16[%c0_40, %c0_41] : memref<8x128xf32, #tpu.memory_space<vmem>>, vector<8x128xf32>
    tpu.vector_store %arg16[%c0_40, %c0_41], %46 {strides = array<i32>} : memref<8x128xf32, #tpu.memory_space<vmem>>, vector<8x128xf32>,
    %cst_42 = arith.constant dense<0xFF800000> : vector<128xf32>
    %48 = vector.multi_reduction <maximumf>, %46, %cst_42 [0] : vector<8x128xf32> to vector<128xf32>
    %49 = vector.shape_cast %48 : vector<128xf32> to vector<1x128xf32>
    %50 = vector.broadcast %49 : vector<1x128xf32> to vector<8x128xf32>
    %51 = arith.subf %46, %50 : vector<8x128xf32>
    %52 = math.exp %51 : vector<8x128xf32>
    %cst_43 = arith.constant dense<0.000000e+00> : vector<128xf32>
    %53 = vector.multi_reduction <add>, %52, %cst_43 [0] : vector<8x128xf32> to vector<128xf32>
    %54 = vector.shape_cast %53 : vector<128xf32> to vector<1x128xf32>
    %55 = vector.broadcast %54 : vector<1x128xf32> to vector<8x128xf32>
    %56 = arith.divf %52, %55 : vector<8x128xf32>
    %c0_44 = arith.constant 0 : index
    %c0_45 = arith.constant 0 : index
    %57 = vector.load %arg17[%c0_44, %c0_45] : memref<8x128xf32, #tpu.memory_space<vmem>>, vector<8x128xf32>
    tpu.vector_store %arg17[%c0_44, %c0_45], %56 {strides = array<i32>} : memref<8x128xf32, #tpu.memory_space<vmem>>, vector<8x128xf32>,
    return
  }
  func.func @transform_0(%arg0: i32) -> (i32, i32) {
    %c0_i32 = arith.constant 0 : i32
    %c0_i32_0 = arith.constant 0 : i32
    return %c0_i32, %arg0 : i32, i32
  }
  func.func @transform_1(%arg0: i32) -> (i32, i32) {
    %c0_i32 = arith.constant 0 : i32
    %c0_i32_0 = arith.constant 0 : i32
    %c0_i32_1 = arith.constant 0 : i32
    return %c0_i32, %c0_i32_0 : i32, i32
  }
  func.func @transform_2(%arg0: i32) -> (i32, i32) {
    %c0_i32 = arith.constant 0 : i32
    %c0_i32_0 = arith.constant 0 : i32
    %c0_i32_1 = arith.constant 0 : i32
    return %c0_i32, %c0_i32_0 : i32, i32
  }
  func.func @transform_3(%arg0: i32) -> (i32, i32) {
    %c0_i32 = arith.constant 0 : i32
    %c0_i32_0 = arith.constant 0 : i32
    %c0_i32_1 = arith.constant 0 : i32
    return %c0_i32, %c0_i32_0 : i32, i32
  }
  func.func @transform_4(%arg0: i32) -> (i32, i32) {
    %c0_i32 = arith.constant 0 : i32
    %c0_i32_0 = arith.constant 0 : i32
    %c0_i32_1 = arith.constant 0 : i32
    return %c0_i32, %c0_i32_0 : i32, i32
  }
  func.func @transform_5(%arg0: i32) -> (i32, i32) {
    %c0_i32 = arith.constant 0 : i32
    %c0_i32_0 = arith.constant 0 : i32
    %c0_i32_1 = arith.constant 0 : i32
    return %c0_i32, %c0_i32_0 : i32, i32
  }
  func.func @transform_6(%arg0: i32) -> (i32, i32) {
    %c0_i32 = arith.constant 0 : i32
    %c0_i32_0 = arith.constant 0 : i32
    %c0_i32_1 = arith.constant 0 : i32
    return %c0_i32, %c0_i32_0 : i32, i32
  }
  func.func @transform_7(%arg0: i32) -> (i32, i32) {
    %c0_i32 = arith.constant 0 : i32
    %c0_i32_0 = arith.constant 0 : i32
    %c0_i32_1 = arith.constant 0 : i32
    return %c0_i32, %c0_i32_0 : i32, i32
  }
  func.func @transform_8(%arg0: i32) -> (i32, i32) {
    %c0_i32 = arith.constant 0 : i32
    %c0_i32_0 = arith.constant 0 : i32
    %c0_i32_1 = arith.constant 0 : i32
    return %c0_i32, %c0_i32_0 : i32, i32
  }
  func.func @transform_9(%arg0: i32) -> (i32, i32) {
    %c0_i32 = arith.constant 0 : i32
    %c0_i32_0 = arith.constant 0 : i32
    %c0_i32_1 = arith.constant 0 : i32
    return %c0_i32, %c0_i32_0 : i32, i32
  }
  func.func @transform_10(%arg0: i32) -> (i32, i32) {
    %c0_i32 = arith.constant 0 : i32
    %c0_i32_0 = arith.constant 0 : i32
    %c0_i32_1 = arith.constant 0 : i32
    return %c0_i32, %c0_i32_0 : i32, i32
  }
  func.func @transform_11(%arg0: i32) -> (i32, i32) {
    %c0_i32 = arith.constant 0 : i32
    %c0_i32_0 = arith.constant 0 : i32
    %c0_i32_1 = arith.constant 0 : i32
    return %c0_i32, %c0_i32_0 : i32, i32
  }
  func.func @transform_12(%arg0: i32) -> (i32, i32) {
    %c0_i32 = arith.constant 0 : i32
    %c0_i32_0 = arith.constant 0 : i32
    %c0_i32_1 = arith.constant 0 : i32
    return %c0_i32, %c0_i32_0 : i32, i32
  }
  func.func @transform_13(%arg0: i32) -> (i32, i32) {
    %c0_i32 = arith.constant 0 : i32
    %c0_i32_0 = arith.constant 0 : i32
    return %c0_i32, %arg0 : i32, i32
  }
  func.func @transform_14(%arg0: i32) -> (i32, i32) {
    %c0_i32 = arith.constant 0 : i32
    %c0_i32_0 = arith.constant 0 : i32
    return %c0_i32, %arg0 : i32, i32
  }
  func.func @transform_15(%arg0: i32) -> (i32, i32) {
    %c0_i32 = arith.constant 0 : i32
    %c0_i32_0 = arith.constant 0 : i32
    return %c0_i32, %arg0 : i32, i32
  }
  func.func @transform_16(%arg0: i32) -> (i32, i32) {
    %c0_i32 = arith.constant 0 : i32
    %c0_i32_0 = arith.constant 0 : i32
    return %c0_i32, %arg0 : i32, i32
  }
}

</mosaic_0001>

<llo_original>
// kernel: net_forward.1
$region0: #{net_forward.1}
  #allocation0 [shape = 'u32[]', space=smem, size = 0x4, offset = 0x4, fixed_abs, tag = 'smem constant byte address 0x4 - core index']
  #allocation1 [shape = 'u32[144,128]{1,0:T(1,128)}', space=vmem, size = 0x12000, scoped, tag = 'internal scratch']
  %s0 = inlined_call_operand.vmem [shape: f32[16,128], index: 0, kind: input, shape index: {}]
  %s1 = inlined_call_operand.vmem [shape: f32[32,16], index: 1, kind: input, shape index: {}]
  %s2 = inlined_call_operand.vmem [shape: f32[32,1], index: 2, kind: input, shape index: {}]
  %s3 = inlined_call_operand.vmem [shape: f32[32,32], index: 3, kind: input, shape index: {}]
  %s4 = inlined_call_operand.vmem [shape: f32[32,1], index: 4, kind: input, shape index: {}]
  %s5 = inlined_call_operand.vmem [shape: f32[32,32], index: 5, kind: input, shape index: {}]
  %s6 = inlined_call_operand.vmem [shape: f32[32,1], index: 6, kind: input, shape index: {}]
  %s7 = inlined_call_operand.vmem [shape: f32[64,32], index: 7, kind: input, shape index: {}]
  %s8 = inlined_call_operand.vmem [shape: f32[64,1], index: 8, kind: input, shape index: {}]
  %s9 = inlined_call_operand.vmem [shape: f32[32,32], index: 9, kind: input, shape index: {}]
  %s10 = inlined_call_operand.vmem [shape: f32[32,1], index: 10, kind: input, shape index: {}]
  %s11 = inlined_call_operand.vmem [shape: f32[8,32], index: 11, kind: input, shape index: {}]
  %s12 = inlined_call_operand.vmem [shape: f32[8,1], index: 12, kind: input, shape index: {}]
  %s13 = inlined_call_operand.vmem [shape: f32[32,128], index: 13, kind: output, shape index: {0}]
  %s14 = inlined_call_operand.vmem [shape: f32[32,128], index: 14, kind: output, shape index: {1}]
  %s15 = inlined_call_operand.vmem [shape: f32[8,128], index: 15, kind: output, shape index: {2}]
  %s16 = inlined_call_operand.vmem [shape: f32[8,128], index: 16, kind: output, shape index: {3}]
  %17 = xla_tuple %s13, %s14, %s15, %s16
  %s18 = sld [smem:[#allocation0]]
  $region86: #{net_forward.1} parent=0
    _
  %s20 = ssub.s32 1, %s18
  %s21 = scalar_select 0, %s20, %s18
  // Predicated region
  $region2: #{net_forward.1} parent=0 // pred_check
    _
  $region3: #{net_forward.1} parent=0 // pred_check_branch
    %23 = sbr.rel (0) target = $region5
  $region4: #{net_forward.1} parent=0 // pred_region
    _
  $region5: #{net_forward.1} parent=0 // pred_fallthru
    _
  // Predicated region
  $region6: #{net_forward.1} parent=0 // pred_check
    _
  $region7: #{net_forward.1} parent=0 // pred_check_branch
    %25 = sbr.rel (0) target = $region9
  $region8: #{net_forward.1} parent=0 // pred_region
    _
  $region9: #{net_forward.1} parent=0 // pred_fallthru
    _
  // Predicated region
  $region10: #{net_forward.1} parent=0 // pred_check
    _
  $region11: #{net_forward.1} parent=0 // pred_check_branch
    %27 = sbr.rel (0) target = $region13
  $region12: #{net_forward.1} parent=0 // pred_region
    _
  $region13: #{net_forward.1} parent=0 // pred_fallthru
    _
  // Predicated region
  $region14: #{net_forward.1} parent=0 // pred_check
    _
  $region15: #{net_forward.1} parent=0 // pred_check_branch
    %29 = sbr.rel (0) target = $region17
  $region16: #{net_forward.1} parent=0 // pred_region
    _
  $region17: #{net_forward.1} parent=0 // pred_fallthru
    _
  // Predicated region
  $region18: #{net_forward.1} parent=0 // pred_check
    _
  $region19: #{net_forward.1} parent=0 // pred_check_branch
    %31 = sbr.rel (0) target = $region21
  $region20: #{net_forward.1} parent=0 // pred_region
    _
  $region21: #{net_forward.1} parent=0 // pred_fallthru
    _
  // Predicated region
  $region22: #{net_forward.1} parent=0 // pred_check
    _
  $region23: #{net_forward.1} parent=0 // pred_check_branch
    %33 = sbr.rel (0) target = $region25
  $region24: #{net_forward.1} parent=0 // pred_region
    _
  $region25: #{net_forward.1} parent=0 // pred_fallthru
    _
  // Predicated region
  $region26: #{net_forward.1} parent=0 // pred_check
    _
  $region27: #{net_forward.1} parent=0 // pred_check_branch
    %35 = sbr.rel (0) target = $region29
  $region28: #{net_forward.1} parent=0 // pred_region
    _
  $region29: #{net_forward.1} parent=0 // pred_fallthru
    _
  // Predicated region
  $region30: #{net_forward.1} parent=0 // pred_check
    _
  $region31: #{net_forward.1} parent=0 // pred_check_branch
    %37 = sbr.rel (0) target = $region33
  $region32: #{net_forward.1} parent=0 // pred_region
    _
  $region33: #{net_forward.1} parent=0 // pred_fallthru
    _
  // Predicated region
  $region34: #{net_forward.1} parent=0 // pred_check
    _
  $region35: #{net_forward.1} parent=0 // pred_check_branch
    %39 = sbr.rel (0) target = $region37
  $region36: #{net_forward.1} parent=0 // pred_region
    _
  $region37: #{net_forward.1} parent=0 // pred_fallthru
    _
  // Predicated region
  $region38: #{net_forward.1} parent=0 // pred_check
    _
  $region39: #{net_forward.1} parent=0 // pred_check_branch
    %41 = sbr.rel (0) target = $region41
  $region40: #{net_forward.1} parent=0 // pred_region
    _
  $region41: #{net_forward.1} parent=0 // pred_fallthru
    _
  // Predicated region
  $region42: #{net_forward.1} parent=0 // pred_check
    _
  $region43: #{net_forward.1} parent=0 // pred_check_branch
    %43 = sbr.rel (0) target = $region45
  $region44: #{net_forward.1} parent=0 // pred_region
    _
  $region45: #{net_forward.1} parent=0 // pred_fallthru
    _
  // Predicated region
  $region46: #{net_forward.1} parent=0 // pred_check
    _
  $region47: #{net_forward.1} parent=0 // pred_check_branch
    %45 = sbr.rel (0) target = $region49
  $region48: #{net_forward.1} parent=0 // pred_region
    _
  $region49: #{net_forward.1} parent=0 // pred_fallthru
    _
  // Predicated region
  $region50: #{net_forward.1} parent=0 // pred_check
    _
  $region51: #{net_forward.1} parent=0 // pred_check_branch
    %47 = sbr.rel (0) target = $region53
  $region52: #{net_forward.1} parent=0 // pred_region
    _
  $region53: #{net_forward.1} parent=0 // pred_fallthru
    _
  %v48 = vld [vmem:[%s0] sm:$0xff]
  %v49 = vld [vmem:[%s0 + $0x8] sm:$0xff]
  %v50 = vld [vmem:[%s1] sm:$0xff]
  %v51 = vld [vmem:[%s1 + $0x8] sm:$0xff]
  %v52 = vld [vmem:[%s1 + $0x10] sm:$0xff]
  %v53 = vld [vmem:[%s1 + $0x18] sm:$0xff]
  %v54 = vld [vmem:[%s2] sm:$0xff]
  %v55 = vld [vmem:[%s2 + $0x8] sm:$0xff]
  %v56 = vld [vmem:[%s2 + $0x10] sm:$0xff]
  %v57 = vld [vmem:[%s2 + $0x18] sm:$0xff]
  %59 = vset.pattern.permute.xlu0 0
  %60 = vperm.xlu0 %59, %v54
  %v61 = vpop.permute.xlu0 %60
  %64 = vset.pattern.permute.xlu0 0
  %65 = vperm.xlu0 %64, %v55
  %v66 = vpop.permute.xlu0 %65
  %69 = vset.pattern.permute.xlu0 0
  %70 = vperm.xlu0 %69, %v56
  %v71 = vpop.permute.xlu0 %70
  %74 = vset.pattern.permute.xlu0 0
  %75 = vperm.xlu0 %74, %v57
  %v76 = vpop.permute.xlu0 %75
  %vm78 = vcmask 130048
  %v80 = vsel %vm78, %v50, 0
  %v83 = vsel %vm78, %v51, 0
  %v86 = vsel %vm78, %v52, 0
  %v89 = vsel %vm78, %v53, 0
  %91 = vmatprep.subr.mxu0 0.0
  %92 = vmatpush1.msra.mxu0 %v48
  %93 = vmatprep.subr.mxu0 0.0
  %94 = vmatpush1.msra.mxu0 %v49
  %95 = vmatprep.subr.mxu0 0.0
  %96 = vmatpush1.msra.mxu0 0.0
  %97 = vmatprep.subr.mxu0 0.0
  %98 = vmatpush1.msra.mxu0 0.0
  %99 = vmatprep.subr.mxu0 0.0
  %100 = vmatpush1.msra.mxu0 0.0
  %101 = vmatprep.subr.mxu0 0.0
  %102 = vmatpush1.msra.mxu0 0.0
  %103 = vmatprep.subr.mxu0 0.0
  %104 = vmatpush1.msra.mxu0 0.0
  %105 = vmatprep.subr.mxu0 0.0
  %106 = vmatpush1.msra.mxu0 0.0
  %107 = vmatprep.subr.mxu0 0.0
  %108 = vmatpush1.msra.mxu0 0.0
  %109 = vmatprep.subr.mxu0 0.0
  %110 = vmatpush1.msra.mxu0 0.0
  %111 = vmatprep.subr.mxu0 0.0
  %112 = vmatpush1.msra.mxu0 0.0
  %113 = vmatprep.subr.mxu0 0.0
  %114 = vmatpush1.msra.mxu0 0.0
  %115 = vmatprep.subr.mxu0 0.0
  %116 = vmatpush1.msra.mxu0 0.0
  %117 = vmatprep.subr.mxu0 0.0
  %118 = vmatpush1.msra.mxu0 0.0
  %119 = vmatprep.subr.mxu0 0.0
  %120 = vmatpush1.msra.mxu0 0.0
  %121 = vmatprep.subr.mxu0 0.0
  %122 = vmatpush1.msra.mxu0 0.0
  %123 = vmatprep.subr.mxu0 0.0
  %124 = vmatpush1.msra.mxu0 0.0
  %125 = vmatprep.subr.mxu0 0.0
  %126 = vmatpush1.msra.mxu0 0.0
  %127 = vmatprep.subr.mxu0 0.0
  %128 = vmatpush1.msra.mxu0 0.0
  %129 = vmatprep.subr.mxu0 0.0
  %130 = vmatpush1.msra.mxu0 0.0
  %131 = vmatprep.subr.mxu0 0.0
  %132 = vmatpush1.msra.mxu0 0.0
  %133 = vmatprep.subr.mxu0 0.0
  %134 = vmatpush1.msra.mxu0 0.0
  %135 = vmatprep.subr.mxu0 0.0
  %136 = vmatpush1.msra.mxu0 0.0
  %137 = vmatprep.subr.mxu0 0.0
  %138 = vmatpush1.msra.mxu0 0.0
  %139 = vmatprep.subr.mxu0 0.0
  %140 = vmatpush1.msra.mxu0 0.0
  %141 = vmatprep.subr.mxu0 0.0
  %142 = vmatpush1.msra.mxu0 0.0
  %143 = vmatprep.subr.mxu0 0.0
  %144 = vmatpush1.msra.mxu0 0.0
  %145 = vmatprep.subr.mxu0 0.0
  %146 = vmatpush1.msra.mxu0 0.0
  %147 = vmatprep.subr.mxu0 0.0
  %148 = vmatpush1.msra.mxu0 0.0
  %149 = vmatprep.subr.mxu0 0.0
  %150 = vmatpush1.msra.mxu0 0.0
  %151 = vmatprep.subr.mxu0 0.0
  %152 = vmatpush1.msra.mxu0 0.0
  %153 = vmatprep.subr.mxu0 0.0
  %154 = vmatpush1.msra.mxu0 0.0
  %155 = vmatprep.mubr.f32.mxu0 0.0
  %156 = vmatmul.mubr.f32.gmra.mrb[0].mxu0 %v80
  %v157 = vpop.f32.mrb[0].mxu0
  %v158 = vadd.f32 %v61, %v157
  %v159 = vpop.f32.mrb[0].mxu0
  %160 = vmatprep.mubr.f32.mxu0 0.0
  %161 = vmatmul.mubr.f32.gmra.mrb[0].mxu0 %v83
  %v162 = vpop.f32.mrb[0].mxu0
  %v163 = vadd.f32 %v66, %v162
  %v164 = vpop.f32.mrb[0].mxu0
  %165 = vmatprep.mubr.f32.mxu0 0.0
  %166 = vmatmul.mubr.f32.gmra.mrb[0].mxu0 %v86
  %v167 = vpop.f32.mrb[0].mxu0
  %v168 = vadd.f32 %v71, %v167
  %v169 = vpop.f32.mrb[0].mxu0
  %170 = vmatprep.mubr.f32.mxu0 0.0
  %171 = vmatmul.mubr.f32.gmra.mrb[0].mxu0 %v89
  %v172 = vpop.f32.mrb[0].mxu0
  %v173 = vadd.f32 %v76, %v172
  %v174 = vpop.f32.mrb[0].mxu0
  %175 = vdwg.mxu0
  %v176 = vmax.f32 %v158, 0.0
  %v177 = vmax.f32 %v163, 0.0
  %v178 = vmax.f32 %v168, 0.0
  %v179 = vmax.f32 %v173, 0.0
  %v180 = vld [vmem:[%s3] sm:$0xff]
  %v181 = vld [vmem:[%s3 + $0x8] sm:$0xff]
  %v182 = vld [vmem:[%s3 + $0x10] sm:$0xff]
  %v183 = vld [vmem:[%s3 + $0x18] sm:$0xff]
  %v184 = vld [vmem:[%s4] sm:$0xff]
  %v185 = vld [vmem:[%s4 + $0x8] sm:$0xff]
  %v186 = vld [vmem:[%s4 + $0x10] sm:$0xff]
  %v187 = vld [vmem:[%s4 + $0x18] sm:$0xff]
  %189 = vset.pattern.permute.xlu0 0
  %190 = vperm.xlu0 %189, %v184
  %v191 = vpop.permute.xlu0 %190
  %194 = vset.pattern.permute.xlu0 0
  %195 = vperm.xlu0 %194, %v185
  %v196 = vpop.permute.xlu0 %195
  %199 = vset.pattern.permute.xlu0 0
  %200 = vperm.xlu0 %199, %v186
  %v201 = vpop.permute.xlu0 %200
  %204 = vset.pattern.permute.xlu0 0
  %205 = vperm.xlu0 %204, %v187
  %v206 = vpop.permute.xlu0 %205
  %vm208 = vcmask 261120
  %v210 = vsel %vm208, %v180, 0
  %v213 = vsel %vm208, %v181, 0
  %v216 = vsel %vm208, %v182, 0
  %v219 = vsel %vm208, %v183, 0
  %221 = vmatprep.subr.mxu0 0.0
  %222 = vmatpush1.msra.mxu0 %v176
  %223 = vmatprep.subr.mxu0 0.0
  %224 = vmatpush1.msra.mxu0 %v177
  %225 = vmatprep.subr.mxu0 0.0
  %226 = vmatpush1.msra.mxu0 %v178
  %227 = vmatprep.subr.mxu0 0.0
  %228 = vmatpush1.msra.mxu0 %v179
  %229 = vmatprep.subr.mxu0 0.0
  %230 = vmatpush1.msra.mxu0 0.0
  %231 = vmatprep.subr.mxu0 0.0
  %232 = vmatpush1.msra.mxu0 0.0
  %233 = vmatprep.subr.mxu0 0.0
  %234 = vmatpush1.msra.mxu0 0.0
  %235 = vmatprep.subr.mxu0 0.0
  %236 = vmatpush1.msra.mxu0 0.0
  %237 = vmatprep.subr.mxu0 0.0
  %238 = vmatpush1.msra.mxu0 0.0
  %239 = vmatprep.subr.mxu0 0.0
  %240 = vmatpush1.msra.mxu0 0.0
  %241 = vmatprep.subr.mxu0 0.0
  %242 = vmatpush1.msra.mxu0 0.0
  %243 = vmatprep.subr.mxu0 0.0
  %244 = vmatpush1.msra.mxu0 0.0
  %245 = vmatprep.subr.mxu0 0.0
  %246 = vmatpush1.msra.mxu0 0.0
  %247 = vmatprep.subr.mxu0 0.0
  %248 = vmatpush1.msra.mxu0 0.0
  %249 = vmatprep.subr.mxu0 0.0
  %250 = vmatpush1.msra.mxu0 0.0
  %251 = vmatprep.subr.mxu0 0.0
  %252 = vmatpush1.msra.mxu0 0.0
  %253 = vmatprep.subr.mxu0 0.0
  %254 = vmatpush1.msra.mxu0 0.0
  %255 = vmatprep.subr.mxu0 0.0
  %256 = vmatpush1.msra.mxu0 0.0
  %257 = vmatprep.subr.mxu0 0.0
  %258 = vmatpush1.msra.mxu0 0.0
  %259 = vmatprep.subr.mxu0 0.0
  %260 = vmatpush1.msra.mxu0 0.0
  %261 = vmatprep.subr.mxu0 0.0
  %262 = vmatpush1.msra.mxu0 0.0
  %263 = vmatprep.subr.mxu0 0.0
  %264 = vmatpush1.msra.mxu0 0.0
  %265 = vmatprep.subr.mxu0 0.0
  %266 = vmatpush1.msra.mxu0 0.0
  %267 = vmatprep.subr.mxu0 0.0
  %268 = vmatpush1.msra.mxu0 0.0
  %269 = vmatprep.subr.mxu0 0.0
  %270 = vmatpush1.msra.mxu0 0.0
  %271 = vmatprep.subr.mxu0 0.0
  %272 = vmatpush1.msra.mxu0 0.0
  %273 = vmatprep.subr.mxu0 0.0
  %274 = vmatpush1.msra.mxu0 0.0
  %275 = vmatprep.subr.mxu0 0.0
  %276 = vmatpush1.msra.mxu0 0.0
  %277 = vmatprep.subr.mxu0 0.0
  %278 = vmatpush1.msra.mxu0 0.0
  %279 = vmatprep.subr.mxu0 0.0
  %280 = vmatpush1.msra.mxu0 0.0
  %281 = vmatprep.subr.mxu0 0.0
  %282 = vmatpush1.msra.mxu0 0.0
  %283 = vmatprep.subr.mxu0 0.0
  %284 = vmatpush1.msra.mxu0 0.0
  %285 = vmatprep.mubr.f32.mxu0 0.0
  %286 = vmatmul.mubr.f32.gmra.mrb[0].mxu0 %v210
  %v287 = vpop.f32.mrb[0].mxu0
  %v288 = vadd.f32 %v191, %v287
  %v289 = vpop.f32.mrb[0].mxu0
  %290 = vmatprep.mubr.f32.mxu0 0.0
  %291 = vmatmul.mubr.f32.gmra.mrb[0].mxu0 %v213
  %v292 = vpop.f32.mrb[0].mxu0
  %v293 = vadd.f32 %v196, %v292
  %v294 = vpop.f32.mrb[0].mxu0
  %295 = vmatprep.mubr.f32.mxu0 0.0
  %296 = vmatmul.mubr.f32.gmra.mrb[0].mxu0 %v216
  %v297 = vpop.f32.mrb[0].mxu0
  %v298 = vadd.f32 %v201, %v297
  %v299 = vpop.f32.mrb[0].mxu0
  %300 = vmatprep.mubr.f32.mxu0 0.0
  %301 = vmatmul.mubr.f32.gmra.mrb[0].mxu0 %v219
  %v302 = vpop.f32.mrb[0].mxu0
  %v303 = vadd.f32 %v206, %v302
  %v304 = vpop.f32.mrb[0].mxu0
  %305 = vdwg.mxu0
  %v306 = vmax.f32 %v288, 0.0
  %v307 = vmax.f32 %v293, 0.0
  %v308 = vmax.f32 %v298, 0.0
  %v309 = vmax.f32 %v303, 0.0
  %v310 = vld [vmem:[%s5] sm:$0xff]
  %v311 = vld [vmem:[%s5 + $0x8] sm:$0xff]
  %v312 = vld [vmem:[%s5 + $0x10] sm:$0xff]
  %v313 = vld [vmem:[%s5 + $0x18] sm:$0xff]
  %v314 = vld [vmem:[%s6] sm:$0xff]
  %v315 = vld [vmem:[%s6 + $0x8] sm:$0xff]
  %v316 = vld [vmem:[%s6 + $0x10] sm:$0xff]
  %v317 = vld [vmem:[%s6 + $0x18] sm:$0xff]
  %319 = vset.pattern.permute.xlu0 0
  %320 = vperm.xlu0 %319, %v314
  %v321 = vpop.permute.xlu0 %320
  %324 = vset.pattern.permute.xlu0 0
  %325 = vperm.xlu0 %324, %v315
  %v326 = vpop.permute.xlu0 %325
  %329 = vset.pattern.permute.xlu0 0
  %330 = vperm.xlu0 %329, %v316
  %v331 = vpop.permute.xlu0 %330
  %334 = vset.pattern.permute.xlu0 0
  %335 = vperm.xlu0 %334, %v317
  %v336 = vpop.permute.xlu0 %335
  %v339 = vsel %vm208, %v310, 0
  %v342 = vsel %vm208, %v311, 0
  %v345 = vsel %vm208, %v312, 0
  %v348 = vsel %vm208, %v313, 0
  %350 = vmatprep.subr.mxu0 0.0
  %351 = vmatpush1.msra.mxu0 %v306
  %352 = vmatprep.subr.mxu0 0.0
  %353 = vmatpush1.msra.mxu0 %v307
  %354 = vmatprep.subr.mxu0 0.0
  %355 = vmatpush1.msra.mxu0 %v308
  %356 = vmatprep.subr.mxu0 0.0
  %357 = vmatpush1.msra.mxu0 %v309
  %358 = vmatprep.subr.mxu0 0.0
  %359 = vmatpush1.msra.mxu0 0.0
  %360 = vmatprep.subr.mxu0 0.0
  %361 = vmatpush1.msra.mxu0 0.0
  %362 = vmatprep.subr.mxu0 0.0
  %363 = vmatpush1.msra.mxu0 0.0
  %364 = vmatprep.subr.mxu0 0.0
  %365 = vmatpush1.msra.mxu0 0.0
  %366 = vmatprep.subr.mxu0 0.0
  %367 = vmatpush1.msra.mxu0 0.0
  %368 = vmatprep.subr.mxu0 0.0
  %369 = vmatpush1.msra.mxu0 0.0
  %370 = vmatprep.subr.mxu0 0.0
  %371 = vmatpush1.msra.mxu0 0.0
  %372 = vmatprep.subr.mxu0 0.0
  %373 = vmatpush1.msra.mxu0 0.0
  %374 = vmatprep.subr.mxu0 0.0
  %375 = vmatpush1.msra.mxu0 0.0
  %376 = vmatprep.subr.mxu0 0.0
  %377 = vmatpush1.msra.mxu0 0.0
  %378 = vmatprep.subr.mxu0 0.0
  %379 = vmatpush1.msra.mxu0 0.0
  %380 = vmatprep.subr.mxu0 0.0
  %381 = vmatpush1.msra.mxu0 0.0
  %382 = vmatprep.subr.mxu0 0.0
  %383 = vmatpush1.msra.mxu0 0.0
  %384 = vmatprep.subr.mxu0 0.0
  %385 = vmatpush1.msra.mxu0 0.0
  %386 = vmatprep.subr.mxu0 0.0
  %387 = vmatpush1.msra.mxu0 0.0
  %388 = vmatprep.subr.mxu0 0.0
  %389 = vmatpush1.msra.mxu0 0.0
  %390 = vmatprep.subr.mxu0 0.0
  %391 = vmatpush1.msra.mxu0 0.0
  %392 = vmatprep.subr.mxu0 0.0
  %393 = vmatpush1.msra.mxu0 0.0
  %394 = vmatprep.subr.mxu0 0.0
  %395 = vmatpush1.msra.mxu0 0.0
  %396 = vmatprep.subr.mxu0 0.0
  %397 = vmatpush1.msra.mxu0 0.0
  %398 = vmatprep.subr.mxu0 0.0
  %399 = vmatpush1.msra.mxu0 0.0
  %400 = vmatprep.subr.mxu0 0.0
  %401 = vmatpush1.msra.mxu0 0.0
  %402 = vmatprep.subr.mxu0 0.0
  %403 = vmatpush1.msra.mxu0 0.0
  %404 = vmatprep.subr.mxu0 0.0
  %405 = vmatpush1.msra.mxu0 0.0
  %406 = vmatprep.subr.mxu0 0.0
  %407 = vmatpush1.msra.mxu0 0.0
  %408 = vmatprep.subr.mxu0 0.0
  %409 = vmatpush1.msra.mxu0 0.0
  %410 = vmatprep.subr.mxu0 0.0
  %411 = vmatpush1.msra.mxu0 0.0
  %412 = vmatprep.subr.mxu0 0.0
  %413 = vmatpush1.msra.mxu0 0.0
  %414 = vmatprep.mubr.f32.mxu0 0.0
  %415 = vmatmul.mubr.f32.gmra.mrb[0].mxu0 %v339
  %v416 = vpop.f32.mrb[0].mxu0
  %v417 = vadd.f32 %v321, %v416
  %v418 = vpop.f32.mrb[0].mxu0
  %419 = vmatprep.mubr.f32.mxu0 0.0
  %420 = vmatmul.mubr.f32.gmra.mrb[0].mxu0 %v342
  %v421 = vpop.f32.mrb[0].mxu0
  %v422 = vadd.f32 %v326, %v421
  %v423 = vpop.f32.mrb[0].mxu0
  %424 = vmatprep.mubr.f32.mxu0 0.0
  %425 = vmatmul.mubr.f32.gmra.mrb[0].mxu0 %v345
  %v426 = vpop.f32.mrb[0].mxu0
  %v427 = vadd.f32 %v331, %v426
  %v428 = vpop.f32.mrb[0].mxu0
  %429 = vmatprep.mubr.f32.mxu0 0.0
  %430 = vmatmul.mubr.f32.gmra.mrb[0].mxu0 %v348
  %v431 = vpop.f32.mrb[0].mxu0
  %v432 = vadd.f32 %v336, %v431
  %v433 = vpop.f32.mrb[0].mxu0
  %434 = vdwg.mxu0
  %v435 = vmax.f32 %v417, 0.0
  %v436 = vmax.f32 %v422, 0.0
  %v437 = vmax.f32 %v427, 0.0
  %v438 = vmax.f32 %v432, 0.0
  %439 = vst [vmem:[%s13] sm:$0xff] %v435
  %440 = vst [vmem:[%s13 + $0x8] sm:$0xff] %v436
  %441 = vst [vmem:[%s13 + $0x10] sm:$0xff] %v437
  %442 = vst [vmem:[%s13 + $0x18] sm:$0xff] %v438
  %v443 = vld [vmem:[%s7] sm:$0xff]
  %v444 = vld [vmem:[%s7 + $0x8] sm:$0xff]
  %v445 = vld [vmem:[%s7 + $0x10] sm:$0xff]
  %v446 = vld [vmem:[%s7 + $0x18] sm:$0xff]
  %v447 = vld [vmem:[%s7 + $0x20] sm:$0xff]
  %v448 = vld [vmem:[%s7 + $0x28] sm:$0xff]
  %v449 = vld [vmem:[%s7 + $0x30] sm:$0xff]
  %v450 = vld [vmem:[%s7 + $0x38] sm:$0xff]
  %v451 = vld [vmem:[%s8] sm:$0xff]
  %v452 = vld [vmem:[%s8 + $0x8] sm:$0xff]
  %v453 = vld [vmem:[%s8 + $0x10] sm:$0xff]
  %v454 = vld [vmem:[%s8 + $0x18] sm:$0xff]
  %v455 = vld [vmem:[%s8 + $0x20] sm:$0xff]
  %v456 = vld [vmem:[%s8 + $0x28] sm:$0xff]
  %v457 = vld [vmem:[%s8 + $0x30] sm:$0xff]
  %v458 = vld [vmem:[%s8 + $0x38] sm:$0xff]
  %460 = vset.pattern.permute.xlu0 0
  %461 = vperm.xlu0 %460, %v451
  %v462 = vpop.permute.xlu0 %461
  %465 = vset.pattern.permute.xlu0 0
  %466 = vperm.xlu0 %465, %v452
  %v467 = vpop.permute.xlu0 %466
  %470 = vset.pattern.permute.xlu0 0
  %471 = vperm.xlu0 %470, %v453
  %v472 = vpop.permute.xlu0 %471
  %475 = vset.pattern.permute.xlu0 0
  %476 = vperm.xlu0 %475, %v454
  %v477 = vpop.permute.xlu0 %476
  %480 = vset.pattern.permute.xlu0 0
  %481 = vperm.xlu0 %480, %v455
  %v482 = vpop.permute.xlu0 %481
  %485 = vset.pattern.permute.xlu0 0
  %486 = vperm.xlu0 %485, %v456
  %v487 = vpop.permute.xlu0 %486
  %490 = vset.pattern.permute.xlu0 0
  %491 = vperm.xlu0 %490, %v457
  %v492 = vpop.permute.xlu0 %491
  %495 = vset.pattern.permute.xlu0 0
  %496 = vperm.xlu0 %495, %v458
  %v497 = vpop.permute.xlu0 %496
  %v500 = vsel %vm208, %v443, 0
  %v503 = vsel %vm208, %v444, 0
  %v506 = vsel %vm208, %v445, 0
  %v509 = vsel %vm208, %v446, 0
  %v512 = vsel %vm208, %v447, 0
  %v515 = vsel %vm208, %v448, 0
  %v518 = vsel %vm208, %v449, 0
  %v521 = vsel %vm208, %v450, 0
  %523 = vmatprep.subr.mxu0 0.0
  %524 = vmatpush1.msra.mxu0 %v435
  %525 = vmatprep.subr.mxu0 0.0
  %526 = vmatpush1.msra.mxu0 %v436
  %527 = vmatprep.subr.mxu0 0.0
  %528 = vmatpush1.msra.mxu0 %v437
  %529 = vmatprep.subr.mxu0 0.0
  %530 = vmatpush1.msra.mxu0 %v438
  %531 = vmatprep.subr.mxu0 0.0
  %532 = vmatpush1.msra.mxu0 0.0
  %533 = vmatprep.subr.mxu0 0.0
  %534 = vmatpush1.msra.mxu0 0.0
  %535 = vmatprep.subr.mxu0 0.0
  %536 = vmatpush1.msra.mxu0 0.0
  %537 = vmatprep.subr.mxu0 0.0
  %538 = vmatpush1.msra.mxu0 0.0
  %539 = vmatprep.subr.mxu0 0.0
  %540 = vmatpush1.msra.mxu0 0.0
  %541 = vmatprep.subr.mxu0 0.0
  %542 = vmatpush1.msra.mxu0 0.0
  %543 = vmatprep.subr.mxu0 0.0
  %544 = vmatpush1.msra.mxu0 0.0
  %545 = vmatprep.subr.mxu0 0.0
  %546 = vmatpush1.msra.mxu0 0.0
  %547 = vmatprep.subr.mxu0 0.0
  %548 = vmatpush1.msra.mxu0 0.0
  %549 = vmatprep.subr.mxu0 0.0
  %550 = vmatpush1.msra.mxu0 0.0
  %551 = vmatprep.subr.mxu0 0.0
  %552 = vmatpush1.msra.mxu0 0.0
  %553 = vmatprep.subr.mxu0 0.0
  %554 = vmatpush1.msra.mxu0 0.0
  %555 = vmatprep.subr.mxu0 0.0
  %556 = vmatpush1.msra.mxu0 0.0
  %557 = vmatprep.subr.mxu0 0.0
  %558 = vmatpush1.msra.mxu0 0.0
  %559 = vmatprep.subr.mxu0 0.0
  %560 = vmatpush1.msra.mxu0 0.0
  %561 = vmatprep.subr.mxu0 0.0
  %562 = vmatpush1.msra.mxu0 0.0
  %563 = vmatprep.subr.mxu0 0.0
  %564 = vmatpush1.msra.mxu0 0.0
  %565 = vmatprep.subr.mxu0 0.0
  %566 = vmatpush1.msra.mxu0 0.0
  %567 = vmatprep.subr.mxu0 0.0
  %568 = vmatpush1.msra.mxu0 0.0
  %569 = vmatprep.subr.mxu0 0.0
  %570 = vmatpush1.msra.mxu0 0.0
  %571 = vmatprep.subr.mxu0 0.0
  %572 = vmatpush1.msra.mxu0 0.0
  %573 = vmatprep.subr.mxu0 0.0
  %574 = vmatpush1.msra.mxu0 0.0
  %575 = vmatprep.subr.mxu0 0.0
  %576 = vmatpush1.msra.mxu0 0.0
  %577 = vmatprep.subr.mxu0 0.0
  %578 = vmatpush1.msra.mxu0 0.0
  %579 = vmatprep.subr.mxu0 0.0
  %580 = vmatpush1.msra.mxu0 0.0
  %581 = vmatprep.subr.mxu0 0.0
  %582 = vmatpush1.msra.mxu0 0.0
  %583 = vmatprep.subr.mxu0 0.0
  %584 = vmatpush1.msra.mxu0 0.0
  %585 = vmatprep.subr.mxu0 0.0
  %586 = vmatpush1.msra.mxu0 0.0
  %587 = vmatprep.mubr.f32.mxu0 0.0
  %588 = vmatmul.mubr.f32.gmra.mrb[0].mxu0 %v500
  %v589 = vpop.f32.mrb[0].mxu0
  %v590 = vadd.f32 %v462, %v589
  %v591 = vpop.f32.mrb[0].mxu0
  %592 = vmatprep.mubr.f32.mxu0 0.0
  %593 = vmatmul.mubr.f32.gmra.mrb[0].mxu0 %v503
  %v594 = vpop.f32.mrb[0].mxu0
  %v595 = vadd.f32 %v467, %v594
  %v596 = vpop.f32.mrb[0].mxu0
  %597 = vmatprep.mubr.f32.mxu0 0.0
  %598 = vmatmul.mubr.f32.gmra.mrb[0].mxu0 %v506
  %v599 = vpop.f32.mrb[0].mxu0
  %v600 = vadd.f32 %v472, %v599
  %v601 = vpop.f32.mrb[0].mxu0
  %602 = vmatprep.mubr.f32.mxu0 0.0
  %603 = vmatmul.mubr.f32.gmra.mrb[0].mxu0 %v509
  %v604 = vpop.f32.mrb[0].mxu0
  %v605 = vadd.f32 %v477, %v604
  %v606 = vpop.f32.mrb[0].mxu0
  %607 = vmatprep.mubr.f32.mxu0 0.0
  %608 = vmatmul.mubr.f32.gmra.mrb[0].mxu0 %v512
  %v609 = vpop.f32.mrb[0].mxu0
  %v610 = vadd.f32 %v482, %v609
  %v611 = vpop.f32.mrb[0].mxu0
  %612 = vmatprep.mubr.f32.mxu0 0.0
  %613 = vmatmul.mubr.f32.gmra.mrb[0].mxu0 %v515
  %v614 = vpop.f32.mrb[0].mxu0
  %v615 = vadd.f32 %v487, %v614
  %v616 = vpop.f32.mrb[0].mxu0
  %617 = vmatprep.mubr.f32.mxu0 0.0
  %618 = vmatmul.mubr.f32.gmra.mrb[0].mxu0 %v518
  %v619 = vpop.f32.mrb[0].mxu0
  %v620 = vadd.f32 %v492, %v619
  %v621 = vpop.f32.mrb[0].mxu0
  %622 = vmatprep.mubr.f32.mxu0 0.0
  %623 = vmatmul.mubr.f32.gmra.mrb[0].mxu0 %v521
  %v624 = vpop.f32.mrb[0].mxu0
  %v625 = vadd.f32 %v497, %v624
  %v626 = vpop.f32.mrb[0].mxu0
  %627 = vdwg.mxu0
  %v628 = vmax.f32 %v590, 0.0
  %v629 = vmax.f32 %v595, 0.0
  %v630 = vmax.f32 %v600, 0.0
  %v631 = vmax.f32 %v605, 0.0
  %v632 = vmax.f32 %v610, 0.0
  %v633 = vmax.f32 %v615, 0.0
  %v634 = vmax.f32 %v620, 0.0
  %v635 = vmax.f32 %v625, 0.0
  %v636 = vld [vmem:[%s9] sm:$0xff]
  %v637 = vld [vmem:[%s9 + $0x8] sm:$0xff]
  %v638 = vld [vmem:[%s9 + $0x10] sm:$0xff]
  %v639 = vld [vmem:[%s9 + $0x18] sm:$0xff]
  %v640 = vld [vmem:[%s10] sm:$0xff]
  %v641 = vld [vmem:[%s10 + $0x8] sm:$0xff]
  %v642 = vld [vmem:[%s10 + $0x10] sm:$0xff]
  %v643 = vld [vmem:[%s10 + $0x18] sm:$0xff]
  %645 = vset.pattern.permute.xlu0 0
  %646 = vperm.xlu0 %645, %v640
  %v647 = vpop.permute.xlu0 %646
  %650 = vset.pattern.permute.xlu0 0
  %651 = vperm.xlu0 %650, %v641
  %v652 = vpop.permute.xlu0 %651
  %655 = vset.pattern.permute.xlu0 0
  %656 = vperm.xlu0 %655, %v642
  %v657 = vpop.permute.xlu0 %656
  %660 = vset.pattern.permute.xlu0 0
  %661 = vperm.xlu0 %660, %v643
  %v662 = vpop.permute.xlu0 %661
  %v665 = vsel %vm208, %v636, 0
  %v668 = vsel %vm208, %v637, 0
  %v671 = vsel %vm208, %v638, 0
  %v674 = vsel %vm208, %v639, 0
  %676 = vmatprep.subr.mxu0 0.0
  %677 = vmatpush1.msra.mxu0 %v628
  %678 = vmatprep.subr.mxu0 0.0
  %679 = vmatpush1.msra.mxu0 %v629
  %680 = vmatprep.subr.mxu0 0.0
  %681 = vmatpush1.msra.mxu0 %v630
  %682 = vmatprep.subr.mxu0 0.0
  %683 = vmatpush1.msra.mxu0 %v631
  %684 = vmatprep.subr.mxu0 0.0
  %685 = vmatpush1.msra.mxu0 0.0
  %686 = vmatprep.subr.mxu0 0.0
  %687 = vmatpush1.msra.mxu0 0.0
  %688 = vmatprep.subr.mxu0 0.0
  %689 = vmatpush1.msra.mxu0 0.0
  %690 = vmatprep.subr.mxu0 0.0
  %691 = vmatpush1.msra.mxu0 0.0
  %692 = vmatprep.subr.mxu0 0.0
  %693 = vmatpush1.msra.mxu0 0.0
  %694 = vmatprep.subr.mxu0 0.0
  %695 = vmatpush1.msra.mxu0 0.0
  %696 = vmatprep.subr.mxu0 0.0
  %697 = vmatpush1.msra.mxu0 0.0
  %698 = vmatprep.subr.mxu0 0.0
  %699 = vmatpush1.msra.mxu0 0.0
  %700 = vmatprep.subr.mxu0 0.0
  %701 = vmatpush1.msra.mxu0 0.0
  %702 = vmatprep.subr.mxu0 0.0
  %703 = vmatpush1.msra.mxu0 0.0
  %704 = vmatprep.subr.mxu0 0.0
  %705 = vmatpush1.msra.mxu0 0.0
  %706 = vmatprep.subr.mxu0 0.0
  %707 = vmatpush1.msra.mxu0 0.0
  %708 = vmatprep.subr.mxu0 0.0
  %709 = vmatpush1.msra.mxu0 0.0
  %710 = vmatprep.subr.mxu0 0.0
  %711 = vmatpush1.msra.mxu0 0.0
  %712 = vmatprep.subr.mxu0 0.0
  %713 = vmatpush1.msra.mxu0 0.0
  %714 = vmatprep.subr.mxu0 0.0
  %715 = vmatpush1.msra.mxu0 0.0
  %716 = vmatprep.subr.mxu0 0.0
  %717 = vmatpush1.msra.mxu0 0.0
  %718 = vmatprep.subr.mxu0 0.0
  %719 = vmatpush1.msra.mxu0 0.0
  %720 = vmatprep.subr.mxu0 0.0
  %721 = vmatpush1.msra.mxu0 0.0
  %722 = vmatprep.subr.mxu0 0.0
  %723 = vmatpush1.msra.mxu0 0.0
  %724 = vmatprep.subr.mxu0 0.0
  %725 = vmatpush1.msra.mxu0 0.0
  %726 = vmatprep.subr.mxu0 0.0
  %727 = vmatpush1.msra.mxu0 0.0
  %728 = vmatprep.subr.mxu0 0.0
  %729 = vmatpush1.msra.mxu0 0.0
  %730 = vmatprep.subr.mxu0 0.0
  %731 = vmatpush1.msra.mxu0 0.0
  %732 = vmatprep.subr.mxu0 0.0
  %733 = vmatpush1.msra.mxu0 0.0
  %734 = vmatprep.subr.mxu0 0.0
  %735 = vmatpush1.msra.mxu0 0.0
  %736 = vmatprep.subr.mxu0 0.0
  %737 = vmatpush1.msra.mxu0 0.0
  %738 = vmatprep.subr.mxu0 0.0
  %739 = vmatpush1.msra.mxu0 0.0
  %740 = vmatprep.mubr.f32.mxu0 0.0
  %741 = vmatmul.mubr.f32.gmra.mrb[0].mxu0 %v665
  %v742 = vpop.f32.mrb[0].mxu0
  %v743 = vadd.f32 %v647, %v742
  %v744 = vpop.f32.mrb[0].mxu0
  %745 = vmatprep.mubr.f32.mxu0 0.0
  %746 = vmatmul.mubr.f32.gmra.mrb[0].mxu0 %v668
  %v747 = vpop.f32.mrb[0].mxu0
  %v748 = vadd.f32 %v652, %v747
  %v749 = vpop.f32.mrb[0].mxu0
  %750 = vmatprep.mubr.f32.mxu0 0.0
  %751 = vmatmul.mubr.f32.gmra.mrb[0].mxu0 %v671
  %v752 = vpop.f32.mrb[0].mxu0
  %v753 = vadd.f32 %v657, %v752
  %v754 = vpop.f32.mrb[0].mxu0
  %755 = vmatprep.mubr.f32.mxu0 0.0
  %756 = vmatmul.mubr.f32.gmra.mrb[0].mxu0 %v674
  %v757 = vpop.f32.mrb[0].mxu0
  %v758 = vadd.f32 %v662, %v757
  %v759 = vpop.f32.mrb[0].mxu0
  %760 = vdwg.mxu0
  %v761 = vmax.f32 %v743, 0.0
  %v762 = vmax.f32 %v748, 0.0
  %v763 = vmax.f32 %v753, 0.0
  %v764 = vmax.f32 %v758, 0.0
  %765 = vst [vmem:[%s14] sm:$0xff] %v761
  %766 = vst [vmem:[%s14 + $0x8] sm:$0xff] %v762
  %767 = vst [vmem:[%s14 + $0x10] sm:$0xff] %v763
  %768 = vst [vmem:[%s14 + $0x18] sm:$0xff] %v764
  %v769 = vld [vmem:[%s11] sm:$0xff]
  %v770 = vld [vmem:[%s12] sm:$0xff]
  %772 = vset.pattern.permute.xlu0 0
  %773 = vperm.xlu0 %772, %v770
  %v774 = vpop.permute.xlu0 %773
  %v777 = vsel %vm208, %v769, 0
  %779 = vmatprep.subr.mxu0 0.0
  %780 = vmatpush1.msra.mxu0 %v632
  %781 = vmatprep.subr.mxu0 0.0
  %782 = vmatpush1.msra.mxu0 %v633
  %783 = vmatprep.subr.mxu0 0.0
  %784 = vmatpush1.msra.mxu0 %v634
  %785 = vmatprep.subr.mxu0 0.0
  %786 = vmatpush1.msra.mxu0 %v635
  %787 = vmatprep.subr.mxu0 0.0
  %788 = vmatpush1.msra.mxu0 0.0
  %789 = vmatprep.subr.mxu0 0.0
  %790 = vmatpush1.msra.mxu0 0.0
  %791 = vmatprep.subr.mxu0 0.0
  %792 = vmatpush1.msra.mxu0 0.0
  %793 = vmatprep.subr.mxu0 0.0
  %794 = vmatpush1.msra.mxu0 0.0
  %795 = vmatprep.subr.mxu0 0.0
  %796 = vmatpush1.msra.mxu0 0.0
  %797 = vmatprep.subr.mxu0 0.0
  %798 = vmatpush1.msra.mxu0 0.0
  %799 = vmatprep.subr.mxu0 0.0
  %800 = vmatpush1.msra.mxu0 0.0
  %801 = vmatprep.subr.mxu0 0.0
  %802 = vmatpush1.msra.mxu0 0.0
  %803 = vmatprep.subr.mxu0 0.0
  %804 = vmatpush1.msra.mxu0 0.0
  %805 = vmatprep.subr.mxu0 0.0
  %806 = vmatpush1.msra.mxu0 0.0
  %807 = vmatprep.subr.mxu0 0.0
  %808 = vmatpush1.msra.mxu0 0.0
  %809 = vmatprep.subr.mxu0 0.0
  %810 = vmatpush1.msra.mxu0 0.0
  %811 = vmatprep.subr.mxu0 0.0
  %812 = vmatpush1.msra.mxu0 0.0
  %813 = vmatprep.subr.mxu0 0.0
  %814 = vmatpush1.msra.mxu0 0.0
  %815 = vmatprep.subr.mxu0 0.0
  %816 = vmatpush1.msra.mxu0 0.0
  %817 = vmatprep.subr.mxu0 0.0
  %818 = vmatpush1.msra.mxu0 0.0
  %819 = vmatprep.subr.mxu0 0.0
  %820 = vmatpush1.msra.mxu0 0.0
  %821 = vmatprep.subr.mxu0 0.0
  %822 = vmatpush1.msra.mxu0 0.0
  %823 = vmatprep.subr.mxu0 0.0
  %824 = vmatpush1.msra.mxu0 0.0
  %825 = vmatprep.subr.mxu0 0.0
  %826 = vmatpush1.msra.mxu0 0.0
  %827 = vmatprep.subr.mxu0 0.0
  %828 = vmatpush1.msra.mxu0 0.0
  %829 = vmatprep.subr.mxu0 0.0
  %830 = vmatpush1.msra.mxu0 0.0
  %831 = vmatprep.subr.mxu0 0.0
  %832 = vmatpush1.msra.mxu0 0.0
  %833 = vmatprep.subr.mxu0 0.0
  %834 = vmatpush1.msra.mxu0 0.0
  %835 = vmatprep.subr.mxu0 0.0
  %836 = vmatpush1.msra.mxu0 0.0
  %837 = vmatprep.subr.mxu0 0.0
  %838 = vmatpush1.msra.mxu0 0.0
  %839 = vmatprep.subr.mxu0 0.0
  %840 = vmatpush1.msra.mxu0 0.0
  %841 = vmatprep.subr.mxu0 0.0
  %842 = vmatpush1.msra.mxu0 0.0
  %843 = vmatprep.mubr.f32.mxu0 0.0
  %844 = vmatmul.mubr.f32.gmra.mrb[0].mxu0 %v777
  %v845 = vpop.f32.mrb[0].mxu0
  %v846 = vadd.f32 %v774, %v845
  %v847 = vpop.f32.mrb[0].mxu0
  %848 = vdwg.mxu0
  %v849 = vmax.f32 %v846, 0.0
  %850 = vst [vmem:[%s15] sm:$0xff] %v849
  %v851 = vrot.slane %v849, 4
  %v852 = vmax.f32 %v849, %v851
  %v853 = vrot.slane %v852, 2
  %v854 = vmax.f32 %v852, %v853
  %v855 = vrot.slane %v854, 1
  %v856 = vmax.f32 %v854, %v855
  %v857 = vsub.f32 %v849, %v856
  %v858 = vmul.f32 %v857, 1.442695
  %v859 = vpow.pop %v858
  %v860 = vrot.slane %v859, 4
  %v861 = vadd.f32 %v859, %v860
  %v862 = vrot.slane %v861, 2
  %v863 = vadd.f32 %v861, %v862
  %v864 = vrot.slane %v863, 1
  %v865 = vadd.f32 %v863, %v864
  %v866 = vrcp.pop %v865
  %v867 = vmul.f32 %v859, %v866
  %868 = vst [vmem:[%s16] sm:$0xff] %v867
  // Predicated region
  $region54: #{net_forward.1} parent=0 // pred_check
    _
  $region55: #{net_forward.1} parent=0 // pred_check_branch
    %870 = sbr.rel (0) target = $region57
  $region56: #{net_forward.1} parent=0 // pred_region
    _
  $region57: #{net_forward.1} parent=0 // pred_fallthru
    _
  // Predicated region
  $region58: #{net_forward.1} parent=0 // pred_check
    _
  $region59: #{net_forward.1} parent=0 // pred_check_branch
    %872 = sbr.rel (0) target = $region61
  $region60: #{net_forward.1} parent=0 // pred_region
    _
  $region61: #{net_forward.1} parent=0 // pred_fallthru
    _
  // Predicated region
  $region62: #{net_forward.1} parent=0 // pred_check
    _
  $region63: #{net_forward.1} parent=0 // pred_check_branch
    %874 = sbr.rel (0) target = $region65
  $region64: #{net_forward.1} parent=0 // pred_region
    _
  $region65: #{net_forward.1} parent=0 // pred_fallthru
    _
  // Predicated region
  $region66: #{net_forward.1} parent=0 // pred_check
    _
  $region67: #{net_forward.1} parent=0 // pred_check_branch
    %876 = sbr.rel (0) target = $region69
  $region68: #{net_forward.1} parent=0 // pred_region
    _
  $region69: #{net_forward.1} parent=0 // pred_fallthru
    _
  // Predicated region
  $region70: #{net_forward.1} parent=0 // pred_check
    _
  $region71: #{net_forward.1} parent=0 // pred_check_branch
    %878 = sbr.rel (0) target = $region73
  $region72: #{net_forward.1} parent=0 // pred_region
    _
  $region73: #{net_forward.1} parent=0 // pred_fallthru
    _
  // Predicated region
  $region74: #{net_forward.1} parent=0 // pred_check
    _
  $region75: #{net_forward.1} parent=0 // pred_check_branch
    %880 = sbr.rel (0) target = $region77
  $region76: #{net_forward.1} parent=0 // pred_region
    _
  $region77: #{net_forward.1} parent=0 // pred_fallthru
    _
  // Predicated region
  $region78: #{net_forward.1} parent=0 // pred_check
    _
  $region79: #{net_forward.1} parent=0 // pred_check_branch
    %882 = sbr.rel (0) target = $region81
  $region80: #{net_forward.1} parent=0 // pred_region
    _
  $region81: #{net_forward.1} parent=0 // pred_fallthru
    _
  // Predicated region
  $region82: #{net_forward.1} parent=0 // pred_check
    _
  $region83: #{net_forward.1} parent=0 // pred_check_branch
    %884 = sbr.rel (0) target = $region85
  $region84: #{net_forward.1} parent=0 // pred_region
    _
  $region85: #{net_forward.1} parent=0 // pred_fallthru
    _

</llo_original>
